<compile_context>
chip_gen: v7x
topology: tpu7x:2x2x1
jax: 0.10.0
libtpu: 0.0.40
codegen_flags: <defaults>
</compile_context>

<pallas_src>
import functools

import jax
import jax.numpy as jnp
from jax import lax
from jax.experimental import pallas as pl
from jax.experimental.pallas import tpu as pltpu

BN_EPS = 1e-5
LANE = 128


def ffn_kernel(x_ref, w1_ref, gamma_ref, beta_ref, w2_ref, b2_ref, o_ref):
    h_idx = pl.program_id(0)
    tile_h = w1_ref.shape[1]

    # fc1 for this hidden tile: bf16 operands on the MXU, f32 accumulation.
    # fc1 bias intentionally omitted: BN's batch-mean subtraction cancels it exactly.
    h = jnp.dot(x_ref[...].astype(jnp.bfloat16), w1_ref[...],
                preferred_element_type=jnp.float32)                     # (B, TH) f32

    # Training-mode BatchNorm1d folded to one per-feature scale/shift, all in f32.
    # H tiles split *features*; stats are over the full (resident) batch, so tile-local
    # statistics are exact. Never grid over the batch here.
    mean = jnp.mean(h, axis=0, keepdims=True)                           # (1, TH)
    mean_sq = jnp.mean(h * h, axis=0, keepdims=True)
    var = mean_sq - mean * mean          # biased variance; no bias term -> no cancellation
    gamma = gamma_ref[pl.ds(h_idx, 1), :]                               # resident, sublane-sliced
    beta = beta_ref[pl.ds(h_idx, 1), :]
    scale = gamma * lax.rsqrt(var + BN_EPS)                             # rsqrt -> EUP
    shift = beta - mean * scale
    act = jnp.maximum(h * scale + shift, 0.0).astype(jnp.bfloat16)      # BN affine + ReLU

    # fc2 partial product for this H tile: bf16 operands, f32 accumulation.
    part = jnp.dot(act, w2_ref[...], preferred_element_type=jnp.float32)

    # Fused bias init with the first partial product; accumulate on later tiles.
    @pl.when(h_idx == 0)
    def _first():
        o_ref[...] = part + b2_ref[...]

    @pl.when(h_idx != 0)
    def _accumulate():
        o_ref[...] += part


def prepare_params(w1, b1, gamma, beta, w2, b2, *, tile_h=None, lane=LANE):
    """One-time layout prep (transposes, padding, dtype casts) -- NOT in the hot path.

    Torch layouts in:  w1 (H, I), b1 (H,), gamma/beta (H,), w2 (C, H), b2 (C,).
    Kernel layouts out: w1_t (I, H) bf16, gamma/beta (n_tiles, tile_h) f32,
                        w2_p (H, C_pad) bf16, b2_p (1, C_pad) f32.
    """
    del b1  # exactly cancelled by training-mode BatchNorm's mean subtraction
    hidden = w1.shape[0]
    num_classes = w2.shape[0]
    c_pad = pl.cdiv(num_classes, lane) * lane

    if tile_h is None:
        # Collapse to a single grid step when the whole hidden dim fits comfortably;
        # otherwise 256-wide tiles match v6e/v7x's 256x256 MXU (multiple of 128 for v5e).
        tile_h = hidden if hidden <= 512 else 256
    assert hidden % tile_h == 0 and tile_h % lane == 0
    n_tiles = hidden // tile_h

    w1_t = jnp.asarray(w1, jnp.bfloat16).T                                # (I, H) bf16
    w2_p = (jnp.zeros((hidden, c_pad), jnp.bfloat16)
            .at[:, :num_classes].set(jnp.asarray(w2, jnp.bfloat16).T))    # (H, C_pad) bf16
    b2_p = jnp.zeros((1, c_pad), jnp.float32).at[0, :num_classes].set(b2)
    gamma_t = jnp.asarray(gamma, jnp.float32).reshape(n_tiles, tile_h)
    beta_t = jnp.asarray(beta, jnp.float32).reshape(n_tiles, tile_h)
    return w1_t, gamma_t, beta_t, w2_p, b2_p


def neural_net_forward(x, w1_t, gamma_t, beta_t, w2_p, b2_p, *, num_classes):
    batch, input_size = x.shape
    hidden = w1_t.shape[1]
    n_tiles, tile_h = gamma_t.shape
    c_pad = w2_p.shape[1]
    assert n_tiles * tile_h == hidden

    out_padded = pl.pallas_call(
        ffn_kernel,
        out_shape=jax.ShapeDtypeStruct((batch, c_pad), jnp.float32),
        grid_spec=pltpu.PrefetchScalarGridSpec(
            num_scalar_prefetch=0,
            grid=(n_tiles,),
            in_specs=[
                pl.BlockSpec((batch, input_size), lambda h: (0, 0)),    # x (resident, f32)
                pl.BlockSpec((input_size, tile_h), lambda h: (0, h)),   # w1 tile (bf16)
                pl.BlockSpec((n_tiles, tile_h), lambda h: (0, 0)),      # gamma (resident)
                pl.BlockSpec((n_tiles, tile_h), lambda h: (0, 0)),      # beta (resident)
                pl.BlockSpec((tile_h, c_pad), lambda h: (h, 0)),        # w2 tile (bf16)
                pl.BlockSpec((1, c_pad), lambda h: (0, 0)),             # b2 (resident)
            ],
            out_specs=pl.BlockSpec((batch, c_pad), lambda h: (0, 0)),   # fc2 accumulator
        ),
        compiler_params=pltpu.CompilerParams(
            # H is a reduction axis into the resident output block -> "arbitrary".
            dimension_semantics=("arbitrary",),
            vmem_limit_bytes=32 * 1024 * 1024,
        ),
    )(x, w1_t, gamma_t, beta_t, w2_p, b2_p)

    # Slice the lane-dense padded output back to the real class count.
    return out_padded[:, :num_classes]


def reference_forward(x, w1, b1, gamma, beta, w2, b2):
    h = x @ w1.T + b1
    mean = jnp.mean(h, axis=0, keepdims=True)
    var = jnp.mean((h - mean) ** 2, axis=0, keepdims=True)
    h = (h - mean) / jnp.sqrt(var + BN_EPS)
    h = h * gamma + beta
    h = jnp.maximum(h, 0.0)
    return h @ w2.T + b2


if __name__ == "__main__":
    # batch >= 128 so the MXU LHS rows are filled; num_classes stays the "real" 10.
    batch, input_size, hidden_size, num_classes = 128, 256, 256, 10

    key = jax.random.PRNGKey(0)
    k_x, k_w1, k_b1, k_w2, k_b2, k_g, k_bt = jax.random.split(key, 7)

    bound1 = 1.0 / (input_size ** 0.5)
    bound2 = 1.0 / (hidden_size ** 0.5)
    w1 = jax.random.uniform(k_w1, (hidden_size, input_size), jnp.float32, -bound1, bound1)
    b1 = jax.random.uniform(k_b1, (hidden_size,), jnp.float32, -bound1, bound1)
    w2 = jax.random.uniform(k_w2, (num_classes, hidden_size), jnp.float32, -bound2, bound2)
    b2 = jax.random.uniform(k_b2, (num_classes,), jnp.float32, -bound2, bound2)
    gamma = jax.random.uniform(k_g, (hidden_size,), jnp.float32, 0.5, 1.5)   # BN weight
    beta = jax.random.uniform(k_bt, (hidden_size,), jnp.float32, -0.2, 0.2)  # BN bias

    x = jax.random.normal(k_x, (batch, input_size), jnp.float32)

    # One-time layout prep (bf16 weights, padded fc2, tiled gamma/beta).
    params = prepare_params(w1, b1, gamma, beta, w2, b2)

    fwd = jax.jit(functools.partial(neural_net_forward, num_classes=num_classes))
    out = jax.block_until_ready(fwd(x, *params))

    ref = reference_forward(x, w1, b1, gamma, beta, w2, b2)
    assert out.shape == (batch, num_classes)
    # bf16 MXU operands (f32 accumulation) -> tolerance relaxed vs. the pure-f32 reference.
    assert jnp.allclose(out, ref, atol=5e-2, rtol=5e-2), float(jnp.max(jnp.abs(out - ref)))

    print("KERNEL_OK")
</pallas_src>

<mosaic_0001>
module attributes {stable_mosaic.version = 11 : i64} {
  func.func @ffn_kernel(%arg0: i32, %arg1: memref<128x256xf32, #tpu.memory_space<vmem>>, %arg2: memref<256x256xbf16, #tpu.memory_space<vmem>>, %arg3: memref<1x256xf32, #tpu.memory_space<vmem>>, %arg4: memref<1x256xf32, #tpu.memory_space<vmem>>, %arg5: memref<256x128xbf16, #tpu.memory_space<vmem>>, %arg6: memref<1x128xf32, #tpu.memory_space<vmem>>, %arg7: memref<128x128xf32, #tpu.memory_space<vmem>>) attributes {dimension_semantics = [#tpu.dimension_semantics<arbitrary>], iteration_bounds = array<i64: 1>, scalar_prefetch = 0 : i64, scratch_operands = 0 : i64, tpu.core_type = #tpu.core_type<tc>, window_params = [{pipeline_mode = #tpu.pipeline_mode<synchronous>, transform_indices = @transform_0, window_bounds = array<i64: 128, 256>}, {transform_indices = @transform_1, window_bounds = array<i64: 256, 256>}, {pipeline_mode = #tpu.pipeline_mode<synchronous>, transform_indices = @transform_2, window_bounds = array<i64: 1, 256>}, {pipeline_mode = #tpu.pipeline_mode<synchronous>, transform_indices = @transform_3, window_bounds = array<i64: 1, 256>}, {transform_indices = @transform_4, window_bounds = array<i64: 256, 128>}, {pipeline_mode = #tpu.pipeline_mode<synchronous>, transform_indices = @transform_5, window_bounds = array<i64: 1, 128>}, {pipeline_mode = #tpu.pipeline_mode<synchronous>, transform_indices = @transform_6, window_bounds = array<i64: 128, 128>}]} {
    %c0 = arith.constant 0 : index
    %c0_0 = arith.constant 0 : index
    %0 = vector.load %arg1[%c0, %c0_0] : memref<128x256xf32, #tpu.memory_space<vmem>>, vector<128x256xf32>
    %1 = arith.truncf %0 : vector<128x256xf32> to vector<128x256xbf16>
    %c0_1 = arith.constant 0 : index
    %c0_2 = arith.constant 0 : index
    %2 = vector.load %arg2[%c0_1, %c0_2] : memref<256x256xbf16, #tpu.memory_space<vmem>>, vector<256x256xbf16>
    %cst = arith.constant dense<0.000000e+00> : vector<128x256xf32>
    %3 = tpu.matmul %1, %2, %cst {dimension_numbers = #tpu.dot_dimension_numbers<[1], [0], [0], [1], [0, 0, 1, 1], [], []>} : vector<128x256xbf16>, vector<256x256xbf16>, vector<128x256xf32> -> vector<128x256xf32>
    %cst_3 = arith.constant dense<0.000000e+00> : vector<256xf32>
    %4 = vector.multi_reduction <add>, %3, %cst_3 [0] : vector<128x256xf32> to vector<256xf32>
    %5 = vector.shape_cast %4 : vector<256xf32> to vector<1x256xf32>
    %cst_4 = arith.constant 1.280000e+02 : f32
    %6 = vector.broadcast %cst_4 : f32 to vector<1x256xf32>
    %7 = arith.divf %5, %6 : vector<1x256xf32>
    %8 = arith.mulf %3, %3 : vector<128x256xf32>
    %cst_5 = arith.constant dense<0.000000e+00> : vector<256xf32>
    %9 = vector.multi_reduction <add>, %8, %cst_5 [0] : vector<128x256xf32> to vector<256xf32>
    %10 = vector.shape_cast %9 : vector<256xf32> to vector<1x256xf32>
    %cst_6 = arith.constant 1.280000e+02 : f32
    %11 = vector.broadcast %cst_6 : f32 to vector<1x256xf32>
    %12 = arith.divf %10, %11 : vector<1x256xf32>
    %13 = arith.mulf %7, %7 : vector<1x256xf32>
    %14 = arith.subf %12, %13 : vector<1x256xf32>
    %15 = arith.index_cast %arg0 : i32 to index
    %c0_7 = arith.constant 0 : index
    %16 = vector.load %arg3[%15, %c0_7] : memref<1x256xf32, #tpu.memory_space<vmem>>, vector<1x256xf32>
    %17 = arith.index_cast %arg0 : i32 to index
    %c0_8 = arith.constant 0 : index
    %18 = vector.load %arg4[%17, %c0_8] : memref<1x256xf32, #tpu.memory_space<vmem>>, vector<1x256xf32>
    %cst_9 = arith.constant 9.99999974E-6 : f32
    %19 = vector.broadcast %cst_9 : f32 to vector<1x256xf32>
    %20 = arith.addf %14, %19 : vector<1x256xf32>
    %21 = math.rsqrt %20 : vector<1x256xf32>
    %22 = arith.mulf %16, %21 : vector<1x256xf32>
    %23 = arith.mulf %7, %22 : vector<1x256xf32>
    %24 = arith.subf %18, %23 : vector<1x256xf32>
    %25 = vector.broadcast %22 : vector<1x256xf32> to vector<128x256xf32>
    %26 = arith.mulf %3, %25 : vector<128x256xf32>
    %27 = vector.broadcast %24 : vector<1x256xf32> to vector<128x256xf32>
    %28 = arith.addf %26, %27 : vector<128x256xf32>
    %cst_10 = arith.constant 0.000000e+00 : f32
    %29 = vector.broadcast %cst_10 : f32 to vector<128x256xf32>
    %30 = arith.maximumf %28, %29 : vector<128x256xf32>
    %31 = arith.truncf %30 : vector<128x256xf32> to vector<128x256xbf16>
    %c0_11 = arith.constant 0 : index
    %c0_12 = arith.constant 0 : index
    %32 = vector.load %arg5[%c0_11, %c0_12] : memref<256x128xbf16, #tpu.memory_space<vmem>>, vector<256x128xbf16>
    %cst_13 = arith.constant dense<0.000000e+00> : vector<128x128xf32>
    %33 = tpu.matmul %31, %32, %cst_13 {dimension_numbers = #tpu.dot_dimension_numbers<[1], [0], [0], [1], [0, 0, 1, 1], [], []>} : vector<128x256xbf16>, vector<256x128xbf16>, vector<128x128xf32> -> vector<128x128xf32>
    %c0_i32 = arith.constant 0 : i32
    %34 = arith.cmpi eq, %arg0, %c0_i32 : i32
    %35 = arith.extui %34 : i1 to i32
    %c0_i32_14 = arith.constant 0 : i32
    %36 = arith.cmpi ne, %35, %c0_i32_14 : i32
    scf.if %36 {
      %c0_17 = arith.constant 0 : index
      %c0_18 = arith.constant 0 : index
      %40 = vector.load %arg6[%c0_17, %c0_18] : memref<1x128xf32, #tpu.memory_space<vmem>>, vector<1x128xf32>
      %41 = vector.broadcast %40 : vector<1x128xf32> to vector<128x128xf32>
      %42 = arith.addf %33, %41 : vector<128x128xf32>
      %c0_19 = arith.constant 0 : index
      %c0_20 = arith.constant 0 : index
      %43 = vector.load %arg7[%c0_19, %c0_20] : memref<128x128xf32, #tpu.memory_space<vmem>>, vector<128x128xf32>
      tpu.vector_store %arg7[%c0_19, %c0_20], %42 {strides = array<i32>} : memref<128x128xf32, #tpu.memory_space<vmem>>, vector<128x128xf32>,
    } else {
    }
    %c0_i32_15 = arith.constant 0 : i32
    %37 = arith.cmpi ne, %arg0, %c0_i32_15 : i32
    %38 = arith.extui %37 : i1 to i32
    %c0_i32_16 = arith.constant 0 : i32
    %39 = arith.cmpi ne, %38, %c0_i32_16 : i32
    scf.if %39 {
      %c0_17 = arith.constant 0 : index
      %c0_18 = arith.constant 0 : index
      %40 = vector.load %arg7[%c0_17, %c0_18] : memref<128x128xf32, #tpu.memory_space<vmem>>, vector<128x128xf32>
      %41 = arith.addf %40, %33 : vector<128x128xf32>
      %c0_19 = arith.constant 0 : index
      %c0_20 = arith.constant 0 : index
      %42 = vector.load %arg7[%c0_19, %c0_20] : memref<128x128xf32, #tpu.memory_space<vmem>>, vector<128x128xf32>
      tpu.vector_store %arg7[%c0_19, %c0_20], %41 {strides = array<i32>} : memref<128x128xf32, #tpu.memory_space<vmem>>, vector<128x128xf32>,
    } else {
    }
    return
  }
  func.func @transform_0(%arg0: i32) -> (i32, i32) {
    %c0_i32 = arith.constant 0 : i32
    %c0_i32_0 = arith.constant 0 : i32
    %c0_i32_1 = arith.constant 0 : i32
    return %c0_i32, %c0_i32_0 : i32, i32
  }
  func.func @transform_1(%arg0: i32) -> (i32, i32) {
    %c0_i32 = arith.constant 0 : i32
    %c0_i32_0 = arith.constant 0 : i32
    return %c0_i32, %arg0 : i32, i32
  }
  func.func @transform_2(%arg0: i32) -> (i32, i32) {
    %c0_i32 = arith.constant 0 : i32
    %c0_i32_0 = arith.constant 0 : i32
    %c0_i32_1 = arith.constant 0 : i32
    return %c0_i32, %c0_i32_0 : i32, i32
  }
  func.func @transform_3(%arg0: i32) -> (i32, i32) {
    %c0_i32 = arith.constant 0 : i32
    %c0_i32_0 = arith.constant 0 : i32
    %c0_i32_1 = arith.constant 0 : i32
    return %c0_i32, %c0_i32_0 : i32, i32
  }
  func.func @transform_4(%arg0: i32) -> (i32, i32) {
    %c0_i32 = arith.constant 0 : i32
    %c0_i32_0 = arith.constant 0 : i32
    return %arg0, %c0_i32 : i32, i32
  }
  func.func @transform_5(%arg0: i32) -> (i32, i32) {
    %c0_i32 = arith.constant 0 : i32
    %c0_i32_0 = arith.constant 0 : i32
    %c0_i32_1 = arith.constant 0 : i32
    return %c0_i32, %c0_i32_0 : i32, i32
  }
  func.func @transform_6(%arg0: i32) -> (i32, i32) {
    %c0_i32 = arith.constant 0 : i32
    %c0_i32_0 = arith.constant 0 : i32
    %c0_i32_1 = arith.constant 0 : i32
    return %c0_i32, %c0_i32_0 : i32, i32
  }
}

</mosaic_0001>

<llo_original>
// kernel: neural_net_forward.1
$region0: #{neural_net_forward.1}
  #allocation0 [shape = 'u32[]', space=smem, size = 0x4, offset = 0x4, fixed_abs, tag = 'smem constant byte address 0x4 - core index']
  #allocation1 [shape = 'u32[144,128]{1,0:T(1,128)}', space=vmem, size = 0x12000, scoped, tag = 'internal scratch']
  %s0 = inlined_call_operand.hbm [shape: f32[128,256], index: 0, kind: input, shape index: {}]
  %s1 = inlined_call_operand.hbm [shape: bf16[256,256], index: 1, kind: input, shape index: {}]
  %s2 = inlined_call_operand.vmem [shape: f32[1,256], index: 2, kind: input, shape index: {}]
  %s3 = inlined_call_operand.vmem [shape: f32[1,256], index: 3, kind: input, shape index: {}]
  %s4 = inlined_call_operand.hbm [shape: bf16[256,128], index: 4, kind: input, shape index: {}]
  %s5 = inlined_call_operand.vmem [shape: f32[1,128], index: 5, kind: input, shape index: {}]
  %s6 = inlined_call_operand.vmem [shape: f32[128,128], index: 6, kind: output, shape index: {}]
  %s7 = sld [smem:[#allocation0]]
  $region54: #{neural_net_forward.1} parent=0
    _
  %s9 = ssub.s32 1, %s7
  %s10 = scalar_select 0, %s9, %s7
  $region1: #{neural_net_forward.1} parent=0
    #allocation2 [shape = 'u8[131072]{0}', space=vmem, size = 0x20000, scoped, tag = 'input window, operand 0, single buffered']
    #allocation3 [shape = 's32[1]{0}', space=sflag, size = 0x4, scoped, tag = 'scoped memory for neural_net_forward.1']
    #allocation4 [shape = 'u8[131072]{0}', space=vmem, size = 0x20000, scoped, tag = 'input window, operand 1, single buffered']
    #allocation5 [shape = 's32[1]{0}', space=sflag, size = 0x4, scoped, tag = 'scoped memory for neural_net_forward.1']
    #allocation6 [shape = 'u8[65536]{0}', space=vmem, size = 0x10000, scoped, tag = 'input window, operand 4, single buffered']
    %11 = vsyncpa [#allocation3], 0
    %12 = vsyncpa [#allocation5], 0
    // Predicated region
    $region2: #{neural_net_forward.1} parent=1 // pred_check
      _
    $region3: #{neural_net_forward.1} parent=1 // pred_check_branch
      %14 = sbr.rel (0) target = $region5
    $region4: #{neural_net_forward.1} parent=1 // pred_region
      %s16 = ssub.s32 4096, 4096
      %17 = vsyncadd [#allocation3], %s16
      %s18 = sshll.u32 [#allocation2], 4
      %s19 = int_to_ptr.vmem [resolvable:$true] %s18
      %24 = dma.hbm_to_vmem [thread:$0]  %s0, 4096, %s19, [#allocation3], 256, 256, 16
    $region5: #{neural_net_forward.1} parent=1 // pred_fallthru
      _
    // Predicated region
    $region6: #{neural_net_forward.1} parent=1 // pred_check
      _
    $region7: #{neural_net_forward.1} parent=1 // pred_check_branch
      %26 = sbr.rel (0) target = $region9
    $region8: #{neural_net_forward.1} parent=1 // pred_region
      %s28 = ssub.s32 4096, 4096
      %29 = vsyncadd [#allocation5], %s28
      %s30 = sshll.u32 [#allocation4], 4
      %s31 = int_to_ptr.vmem [resolvable:$true] %s30
      %36 = dma.hbm_to_vmem [thread:$0]  %s1, 4096, %s31, [#allocation5], 128, 128, 8
    $region9: #{neural_net_forward.1} parent=1 // pred_fallthru
      _
    // Predicated region
    $region10: #{neural_net_forward.1} parent=1 // pred_check
      _
    $region11: #{neural_net_forward.1} parent=1 // pred_check_branch
      %38 = sbr.rel (0) target = $region13
    $region12: #{neural_net_forward.1} parent=1 // pred_region
      _
    $region13: #{neural_net_forward.1} parent=1 // pred_fallthru
      _
    // Predicated region
    $region14: #{neural_net_forward.1} parent=1 // pred_check
      _
    $region15: #{neural_net_forward.1} parent=1 // pred_check_branch
      %40 = sbr.rel (0) target = $region17
    $region16: #{neural_net_forward.1} parent=1 // pred_region
      _
    $region17: #{neural_net_forward.1} parent=1 // pred_fallthru
      _
    // Predicated region
    $region18: #{neural_net_forward.1} parent=1 // pred_check
      _
    $region19: #{neural_net_forward.1} parent=1 // pred_check_branch
      %42 = sbr.rel (0) target = $region21
    $region20: #{neural_net_forward.1} parent=1 // pred_region
      %s44 = ssub.s32 2048, 2048
      %45 = vsyncadd [#allocation5], %s44
      %s46 = sshll.u32 [#allocation6], 4
      %s47 = int_to_ptr.vmem [resolvable:$true] %s46
      %52 = dma.hbm_to_vmem [thread:$0]  %s4, 2048, %s47, [#allocation5], 64, 64, 4
    $region21: #{neural_net_forward.1} parent=1 // pred_fallthru
      _
    // Predicated region
    $region22: #{neural_net_forward.1} parent=1 // pred_check
      _
    $region23: #{neural_net_forward.1} parent=1 // pred_check_branch
      %54 = sbr.rel (0) target = $region25
    $region24: #{neural_net_forward.1} parent=1 // pred_region
      _
    $region25: #{neural_net_forward.1} parent=1 // pred_fallthru
      _
    // Predicated region
    $region26: #{neural_net_forward.1} parent=1 // pred_check
      _
    $region27: #{neural_net_forward.1} parent=1 // pred_check_branch
      %56 = sbr.rel (0) target = $region29
    $region28: #{neural_net_forward.1} parent=1 // pred_region
      %57 = dma.done [#allocation3], 4096
    $region29: #{neural_net_forward.1} parent=1 // pred_fallthru
      _
    // Predicated region
    $region30: #{neural_net_forward.1} parent=1 // pred_check
      _
    $region31: #{neural_net_forward.1} parent=1 // pred_check_branch
      %59 = sbr.rel (0) target = $region33
    $region32: #{neural_net_forward.1} parent=1 // pred_region
      %60 = dma.done [#allocation5], 4096
    $region33: #{neural_net_forward.1} parent=1 // pred_fallthru
      _
    // Predicated region
    $region34: #{neural_net_forward.1} parent=1 // pred_check
      _
    $region35: #{neural_net_forward.1} parent=1 // pred_check_branch
      %62 = sbr.rel (0) target = $region37
    $region36: #{neural_net_forward.1} parent=1 // pred_region
      %63 = dma.done [#allocation5], 2048
    $region37: #{neural_net_forward.1} parent=1 // pred_fallthru
      _
    %v65 = vld [vmem:[#allocation2] sm:$0xff]
    %v66 = vld [vmem:[#allocation2 + $0x8] sm:$0xff]
    %v67 = vld [vmem:[#allocation2 + $0x10] sm:$0xff]
    %v68 = vld [vmem:[#allocation2 + $0x18] sm:$0xff]
    %v69 = vld [vmem:[#allocation2 + $0x20] sm:$0xff]
    %v70 = vld [vmem:[#allocation2 + $0x28] sm:$0xff]
    %v71 = vld [vmem:[#allocation2 + $0x30] sm:$0xff]
    %v72 = vld [vmem:[#allocation2 + $0x38] sm:$0xff]
    %v73 = vld [vmem:[#allocation2 + $0x40] sm:$0xff]
    %v74 = vld [vmem:[#allocation2 + $0x48] sm:$0xff]
    %v75 = vld [vmem:[#allocation2 + $0x50] sm:$0xff]
    %v76 = vld [vmem:[#allocation2 + $0x58] sm:$0xff]
    %v77 = vld [vmem:[#allocation2 + $0x60] sm:$0xff]
    %v78 = vld [vmem:[#allocation2 + $0x68] sm:$0xff]
    %v79 = vld [vmem:[#allocation2 + $0x70] sm:$0xff]
    %v80 = vld [vmem:[#allocation2 + $0x78] sm:$0xff]
    %v81 = vld [vmem:[#allocation2 + $0x80] sm:$0xff]
    %v82 = vld [vmem:[#allocation2 + $0x88] sm:$0xff]
    %v83 = vld [vmem:[#allocation2 + $0x90] sm:$0xff]
    %v84 = vld [vmem:[#allocation2 + $0x98] sm:$0xff]
    %v85 = vld [vmem:[#allocation2 + $0xa0] sm:$0xff]
    %v86 = vld [vmem:[#allocation2 + $0xa8] sm:$0xff]
    %v87 = vld [vmem:[#allocation2 + $0xb0] sm:$0xff]
    %v88 = vld [vmem:[#allocation2 + $0xb8] sm:$0xff]
    %v89 = vld [vmem:[#allocation2 + $0xc0] sm:$0xff]
    %v90 = vld [vmem:[#allocation2 + $0xc8] sm:$0xff]
    %v91 = vld [vmem:[#allocation2 + $0xd0] sm:$0xff]
    %v92 = vld [vmem:[#allocation2 + $0xd8] sm:$0xff]
    %v93 = vld [vmem:[#allocation2 + $0xe0] sm:$0xff]
    %v94 = vld [vmem:[#allocation2 + $0xe8] sm:$0xff]
    %v95 = vld [vmem:[#allocation2 + $0xf0] sm:$0xff]
    %v96 = vld [vmem:[#allocation2 + $0xf8] sm:$0xff]
    %v97 = vpack.c.bf16 %v67, %v65
    %v98 = vpack.c.bf16 %v68, %v66
    %v99 = vpack.c.bf16 %v71, %v69
    %v100 = vpack.c.bf16 %v72, %v70
    %v101 = vpack.c.bf16 %v75, %v73
    %v102 = vpack.c.bf16 %v76, %v74
    %v103 = vpack.c.bf16 %v79, %v77
    %v104 = vpack.c.bf16 %v80, %v78
    %v105 = vpack.c.bf16 %v83, %v81
    %v106 = vpack.c.bf16 %v84, %v82
    %v107 = vpack.c.bf16 %v87, %v85
    %v108 = vpack.c.bf16 %v88, %v86
    %v109 = vpack.c.bf16 %v91, %v89
    %v110 = vpack.c.bf16 %v92, %v90
    %v111 = vpack.c.bf16 %v95, %v93
    %v112 = vpack.c.bf16 %v96, %v94
    %v113 = vld [vmem:[#allocation4] sm:$0xff]
    %v114 = vld [vmem:[#allocation4 + $0x8] sm:$0xff]
    %v115 = vld [vmem:[#allocation4 + $0x10] sm:$0xff]
    %v116 = vld [vmem:[#allocation4 + $0x18] sm:$0xff]
    %v117 = vld [vmem:[#allocation4 + $0x20] sm:$0xff]
    %v118 = vld [vmem:[#allocation4 + $0x28] sm:$0xff]
    %v119 = vld [vmem:[#allocation4 + $0x30] sm:$0xff]
    %v120 = vld [vmem:[#allocation4 + $0x38] sm:$0xff]
    %v121 = vld [vmem:[#allocation4 + $0x40] sm:$0xff]
    %v122 = vld [vmem:[#allocation4 + $0x48] sm:$0xff]
    %v123 = vld [vmem:[#allocation4 + $0x50] sm:$0xff]
    %v124 = vld [vmem:[#allocation4 + $0x58] sm:$0xff]
    %v125 = vld [vmem:[#allocation4 + $0x60] sm:$0xff]
    %v126 = vld [vmem:[#allocation4 + $0x68] sm:$0xff]
    %v127 = vld [vmem:[#allocation4 + $0x70] sm:$0xff]
    %v128 = vld [vmem:[#allocation4 + $0x78] sm:$0xff]
    %v129 = vld [vmem:[#allocation4 + $0x80] sm:$0xff]
    %v130 = vld [vmem:[#allocation4 + $0x88] sm:$0xff]
    %v131 = vld [vmem:[#allocation4 + $0x90] sm:$0xff]
    %v132 = vld [vmem:[#allocation4 + $0x98] sm:$0xff]
    %v133 = vld [vmem:[#allocation4 + $0xa0] sm:$0xff]
    %v134 = vld [vmem:[#allocation4 + $0xa8] sm:$0xff]
    %v135 = vld [vmem:[#allocation4 + $0xb0] sm:$0xff]
    %v136 = vld [vmem:[#allocation4 + $0xb8] sm:$0xff]
    %v137 = vld [vmem:[#allocation4 + $0xc0] sm:$0xff]
    %v138 = vld [vmem:[#allocation4 + $0xc8] sm:$0xff]
    %v139 = vld [vmem:[#allocation4 + $0xd0] sm:$0xff]
    %v140 = vld [vmem:[#allocation4 + $0xd8] sm:$0xff]
    %v141 = vld [vmem:[#allocation4 + $0xe0] sm:$0xff]
    %v142 = vld [vmem:[#allocation4 + $0xe8] sm:$0xff]
    %v143 = vld [vmem:[#allocation4 + $0xf0] sm:$0xff]
    %v144 = vld [vmem:[#allocation4 + $0xf8] sm:$0xff]
    %v177 = vunpack.c.l.b16 %v113
    %v178 = vunpack.c.h.b16 %v113
    %v179 = vunpack.c.l.b16 %v114
    %v180 = vunpack.c.h.b16 %v114
    %v181 = vunpack.c.l.b16 %v115
    %v182 = vunpack.c.h.b16 %v115
    %v183 = vunpack.c.l.b16 %v116
    %v184 = vunpack.c.h.b16 %v116
    %v185 = vunpack.c.l.b16 %v117
    %v186 = vunpack.c.h.b16 %v117
    %v187 = vunpack.c.l.b16 %v118
    %v188 = vunpack.c.h.b16 %v118
    %v189 = vunpack.c.l.b16 %v119
    %v190 = vunpack.c.h.b16 %v119
    %v191 = vunpack.c.l.b16 %v120
    %v192 = vunpack.c.h.b16 %v120
    %v193 = vunpack.c.l.b16 %v121
    %v194 = vunpack.c.h.b16 %v121
    %v195 = vunpack.c.l.b16 %v122
    %v196 = vunpack.c.h.b16 %v122
    %v197 = vunpack.c.l.b16 %v123
    %v198 = vunpack.c.h.b16 %v123
    %v199 = vunpack.c.l.b16 %v124
    %v200 = vunpack.c.h.b16 %v124
    %v201 = vunpack.c.l.b16 %v125
    %v202 = vunpack.c.h.b16 %v125
    %v203 = vunpack.c.l.b16 %v126
    %v204 = vunpack.c.h.b16 %v126
    %v205 = vunpack.c.l.b16 %v127
    %v206 = vunpack.c.h.b16 %v127
    %v207 = vunpack.c.l.b16 %v128
    %v208 = vunpack.c.h.b16 %v128
    %v209 = vunpack.c.l.b16 %v129
    %v210 = vunpack.c.h.b16 %v129
    %v211 = vunpack.c.l.b16 %v130
    %v212 = vunpack.c.h.b16 %v130
    %v213 = vunpack.c.l.b16 %v131
    %v214 = vunpack.c.h.b16 %v131
    %v215 = vunpack.c.l.b16 %v132
    %v216 = vunpack.c.h.b16 %v132
    %v217 = vunpack.c.l.b16 %v133
    %v218 = vunpack.c.h.b16 %v133
    %v219 = vunpack.c.l.b16 %v134
    %v220 = vunpack.c.h.b16 %v134
    %v221 = vunpack.c.l.b16 %v135
    %v222 = vunpack.c.h.b16 %v135
    %v223 = vunpack.c.l.b16 %v136
    %v224 = vunpack.c.h.b16 %v136
    %v225 = vunpack.c.l.b16 %v137
    %v226 = vunpack.c.h.b16 %v137
    %v227 = vunpack.c.l.b16 %v138
    %v228 = vunpack.c.h.b16 %v138
    %v229 = vunpack.c.l.b16 %v139
    %v230 = vunpack.c.h.b16 %v139
    %v231 = vunpack.c.l.b16 %v140
    %v232 = vunpack.c.h.b16 %v140
    %v233 = vunpack.c.l.b16 %v141
    %v234 = vunpack.c.h.b16 %v141
    %v235 = vunpack.c.l.b16 %v142
    %v236 = vunpack.c.h.b16 %v142
    %v237 = vunpack.c.l.b16 %v143
    %v238 = vunpack.c.h.b16 %v143
    %v239 = vunpack.c.l.b16 %v144
    %v240 = vunpack.c.h.b16 %v144
    %v241 = vpack.c.b16 %v179, %v177
    %v242 = vpack.c.b16 %v180, %v178
    %v243 = vpack.c.b16 %v183, %v181
    %v244 = vpack.c.b16 %v184, %v182
    %v245 = vpack.c.b16 %v187, %v185
    %v246 = vpack.c.b16 %v188, %v186
    %v247 = vpack.c.b16 %v191, %v189
    %v248 = vpack.c.b16 %v192, %v190
    %v249 = vpack.c.b16 %v195, %v193
    %v250 = vpack.c.b16 %v196, %v194
    %v251 = vpack.c.b16 %v199, %v197
    %v252 = vpack.c.b16 %v200, %v198
    %v253 = vpack.c.b16 %v203, %v201
    %v254 = vpack.c.b16 %v204, %v202
    %v255 = vpack.c.b16 %v207, %v205
    %v256 = vpack.c.b16 %v208, %v206
    %v257 = vpack.c.b16 %v211, %v209
    %v258 = vpack.c.b16 %v212, %v210
    %v259 = vpack.c.b16 %v215, %v213
    %v260 = vpack.c.b16 %v216, %v214
    %v261 = vpack.c.b16 %v219, %v217
    %v262 = vpack.c.b16 %v220, %v218
    %v263 = vpack.c.b16 %v223, %v221
    %v264 = vpack.c.b16 %v224, %v222
    %v265 = vpack.c.b16 %v227, %v225
    %v266 = vpack.c.b16 %v228, %v226
    %v267 = vpack.c.b16 %v231, %v229
    %v268 = vpack.c.b16 %v232, %v230
    %v269 = vpack.c.b16 %v235, %v233
    %v270 = vpack.c.b16 %v236, %v234
    %v271 = vpack.c.b16 %v239, %v237
    %v272 = vpack.c.b16 %v240, %v238
    %305 = vmatprep.subr.bf16.mxu0 %v242
    %306 = vmatpush1.bf16.msra.mxu0 %v241
    %307 = vmatprep.subr.bf16.mxu0 %v244
    %308 = vmatpush1.bf16.msra.mxu0 %v243
    %309 = vmatprep.subr.bf16.mxu0 %v246
    %310 = vmatpush1.bf16.msra.mxu0 %v245
    %311 = vmatprep.subr.bf16.mxu0 %v248
    %312 = vmatpush1.bf16.msra.mxu0 %v247
    %313 = vmatprep.subr.bf16.mxu0 %v250
    %314 = vmatpush1.bf16.msra.mxu0 %v249
    %315 = vmatprep.subr.bf16.mxu0 %v252
    %316 = vmatpush1.bf16.msra.mxu0 %v251
    %317 = vmatprep.subr.bf16.mxu0 %v254
    %318 = vmatpush1.bf16.msra.mxu0 %v253
    %319 = vmatprep.subr.bf16.mxu0 %v256
    %320 = vmatpush1.bf16.msra.mxu0 %v255
    %321 = vmatprep.subr.bf16.mxu0 %v258
    %322 = vmatpush1.bf16.msra.mxu0 %v257
    %323 = vmatprep.subr.bf16.mxu0 %v260
    %324 = vmatpush1.bf16.msra.mxu0 %v259
    %325 = vmatprep.subr.bf16.mxu0 %v262
    %326 = vmatpush1.bf16.msra.mxu0 %v261
    %327 = vmatprep.subr.bf16.mxu0 %v264
    %328 = vmatpush1.bf16.msra.mxu0 %v263
    %329 = vmatprep.subr.bf16.mxu0 %v266
    %330 = vmatpush1.bf16.msra.mxu0 %v265
    %331 = vmatprep.subr.bf16.mxu0 %v268
    %332 = vmatpush1.bf16.msra.mxu0 %v267
    %333 = vmatprep.subr.bf16.mxu0 %v270
    %334 = vmatpush1.bf16.msra.mxu0 %v269
    %335 = vmatprep.subr.bf16.mxu0 %v272
    %336 = vmatpush1.bf16.msra.mxu0 %v271
    %337 = vmatprep.mubr.bf16.mxu0 %v98
    %338 = vmatmul.mubr.bf16.gmra.mrb[0].mxu0 %v97
    %v339 = vpop.f32.mrb[0].mxu0
    %v340 = vadd.f32 0.0, %v339
    %v341 = vpop.f32.mrb[0].mxu0
    %v342 = vadd.f32 0.0, %v341
    %v343 = vpop.f32.mrb[0].mxu0
    %v344 = vadd.f32 0.0, %v343
    %v345 = vpop.f32.mrb[0].mxu0
    %v346 = vadd.f32 0.0, %v345
    %347 = vmatprep.mubr.bf16.mxu0 %v100
    %348 = vmatmul.mubr.bf16.gmra.mrb[0].mxu0 %v99
    %v349 = vpop.f32.mrb[0].mxu0
    %v350 = vadd.f32 0.0, %v349
    %v351 = vpop.f32.mrb[0].mxu0
    %v352 = vadd.f32 0.0, %v351
    %v353 = vpop.f32.mrb[0].mxu0
    %v354 = vadd.f32 0.0, %v353
    %v355 = vpop.f32.mrb[0].mxu0
    %v356 = vadd.f32 0.0, %v355
    %357 = vmatprep.mubr.bf16.mxu0 %v102
    %358 = vmatmul.mubr.bf16.gmra.mrb[0].mxu0 %v101
    %v359 = vpop.f32.mrb[0].mxu0
    %v360 = vadd.f32 0.0, %v359
    %v361 = vpop.f32.mrb[0].mxu0
    %v362 = vadd.f32 0.0, %v361
    %v363 = vpop.f32.mrb[0].mxu0
    %v364 = vadd.f32 0.0, %v363
    %v365 = vpop.f32.mrb[0].mxu0
    %v366 = vadd.f32 0.0, %v365
    %367 = vmatprep.mubr.bf16.mxu0 %v104
    %368 = vmatmul.mubr.bf16.gmra.mrb[0].mxu0 %v103
    %v369 = vpop.f32.mrb[0].mxu0
    %v370 = vadd.f32 0.0, %v369
    %v371 = vpop.f32.mrb[0].mxu0
    %v372 = vadd.f32 0.0, %v371
    %v373 = vpop.f32.mrb[0].mxu0
    %v374 = vadd.f32 0.0, %v373
    %v375 = vpop.f32.mrb[0].mxu0
    %v376 = vadd.f32 0.0, %v375
    %377 = vmatprep.mubr.bf16.mxu0 %v106
    %378 = vmatmul.mubr.bf16.gmra.mrb[0].mxu0 %v105
    %v379 = vpop.f32.mrb[0].mxu0
    %v380 = vadd.f32 0.0, %v379
    %v381 = vpop.f32.mrb[0].mxu0
    %v382 = vadd.f32 0.0, %v381
    %v383 = vpop.f32.mrb[0].mxu0
    %v384 = vadd.f32 0.0, %v383
    %v385 = vpop.f32.mrb[0].mxu0
    %v386 = vadd.f32 0.0, %v385
    %387 = vmatprep.mubr.bf16.mxu0 %v108
    %388 = vmatmul.mubr.bf16.gmra.mrb[0].mxu0 %v107
    %v389 = vpop.f32.mrb[0].mxu0
    %v390 = vadd.f32 0.0, %v389
    %v391 = vpop.f32.mrb[0].mxu0
    %v392 = vadd.f32 0.0, %v391
    %v393 = vpop.f32.mrb[0].mxu0
    %v394 = vadd.f32 0.0, %v393
    %v395 = vpop.f32.mrb[0].mxu0
    %v396 = vadd.f32 0.0, %v395
    %397 = vmatprep.mubr.bf16.mxu0 %v110
    %398 = vmatmul.mubr.bf16.gmra.mrb[0].mxu0 %v109
    %v399 = vpop.f32.mrb[0].mxu0
    %v400 = vadd.f32 0.0, %v399
    %v401 = vpop.f32.mrb[0].mxu0
    %v402 = vadd.f32 0.0, %v401
    %v403 = vpop.f32.mrb[0].mxu0
    %v404 = vadd.f32 0.0, %v403
    %v405 = vpop.f32.mrb[0].mxu0
    %v406 = vadd.f32 0.0, %v405
    %407 = vmatprep.mubr.bf16.mxu0 %v112
    %408 = vmatmul.mubr.bf16.gmra.mrb[0].mxu0 %v111
    %v409 = vpop.f32.mrb[0].mxu0
    %v410 = vadd.f32 0.0, %v409
    %v411 = vpop.f32.mrb[0].mxu0
    %v412 = vadd.f32 0.0, %v411
    %v413 = vpop.f32.mrb[0].mxu0
    %v414 = vadd.f32 0.0, %v413
    %v415 = vpop.f32.mrb[0].mxu0
    %v416 = vadd.f32 0.0, %v415
    %417 = vdwg.mxu0
    %v418 = vadd.f32 %v340, %v344
    %v419 = vadd.f32 %v418, %v350
    %v420 = vadd.f32 %v419, %v354
    %v421 = vadd.f32 %v420, %v360
    %v422 = vadd.f32 %v421, %v364
    %v423 = vadd.f32 %v422, %v370
    %v424 = vadd.f32 %v423, %v374
    %v425 = vadd.f32 %v424, %v380
    %v426 = vadd.f32 %v425, %v384
    %v427 = vadd.f32 %v426, %v390
    %v428 = vadd.f32 %v427, %v394
    %v429 = vadd.f32 %v428, %v400
    %v430 = vadd.f32 %v429, %v404
    %v431 = vadd.f32 %v430, %v410
    %v432 = vadd.f32 %v431, %v414
    %v433 = vrot.slane %v432, 4
    %v434 = vadd.f32 %v432, %v433
    %v435 = vrot.slane %v434, 2
    %v436 = vadd.f32 %v434, %v435
    %v437 = vrot.slane %v436, 1
    %v438 = vadd.f32 %v436, %v437
    %v439 = vadd.f32 %v342, %v346
    %v440 = vadd.f32 %v439, %v352
    %v441 = vadd.f32 %v440, %v356
    %v442 = vadd.f32 %v441, %v362
    %v443 = vadd.f32 %v442, %v366
    %v444 = vadd.f32 %v443, %v372
    %v445 = vadd.f32 %v444, %v376
    %v446 = vadd.f32 %v445, %v382
    %v447 = vadd.f32 %v446, %v386
    %v448 = vadd.f32 %v447, %v392
    %v449 = vadd.f32 %v448, %v396
    %v450 = vadd.f32 %v449, %v402
    %v451 = vadd.f32 %v450, %v406
    %v452 = vadd.f32 %v451, %v412
    %v453 = vadd.f32 %v452, %v416
    %v454 = vrot.slane %v453, 4
    %v455 = vadd.f32 %v453, %v454
    %v456 = vrot.slane %v455, 2
    %v457 = vadd.f32 %v455, %v456
    %v458 = vrot.slane %v457, 1
    %v459 = vadd.f32 %v457, %v458
    %v460 = vrcp.pop 128.0
    %v461 = vmul.f32 %v438, %v460
    %v462 = vmul.f32 %v459, %v460
    %v463 = vmul.f32 %v340, %v340
    %v464 = vmul.f32 %v342, %v342
    %v465 = vmul.f32 %v344, %v344
    %v466 = vmul.f32 %v346, %v346
    %v467 = vmul.f32 %v350, %v350
    %v468 = vmul.f32 %v352, %v352
    %v469 = vmul.f32 %v354, %v354
    %v470 = vmul.f32 %v356, %v356
    %v471 = vmul.f32 %v360, %v360
    %v472 = vmul.f32 %v362, %v362
    %v473 = vmul.f32 %v364, %v364
    %v474 = vmul.f32 %v366, %v366
    %v475 = vmul.f32 %v370, %v370
    %v476 = vmul.f32 %v372, %v372
    %v477 = vmul.f32 %v374, %v374
    %v478 = vmul.f32 %v376, %v376
    %v479 = vmul.f32 %v380, %v380
    %v480 = vmul.f32 %v382, %v382
    %v481 = vmul.f32 %v384, %v384
    %v482 = vmul.f32 %v386, %v386
    %v483 = vmul.f32 %v390, %v390
    %v484 = vmul.f32 %v392, %v392
    %v485 = vmul.f32 %v394, %v394
    %v486 = vmul.f32 %v396, %v396
    %v487 = vmul.f32 %v400, %v400
    %v488 = vmul.f32 %v402, %v402
    %v489 = vmul.f32 %v404, %v404
    %v490 = vmul.f32 %v406, %v406
    %v491 = vmul.f32 %v410, %v410
    %v492 = vmul.f32 %v412, %v412
    %v493 = vmul.f32 %v414, %v414
    %v494 = vmul.f32 %v416, %v416
    %v495 = vadd.f32 %v463, %v465
    %v496 = vadd.f32 %v495, %v467
    %v497 = vadd.f32 %v496, %v469
    %v498 = vadd.f32 %v497, %v471
    %v499 = vadd.f32 %v498, %v473
    %v500 = vadd.f32 %v499, %v475
    %v501 = vadd.f32 %v500, %v477
    %v502 = vadd.f32 %v501, %v479
    %v503 = vadd.f32 %v502, %v481
    %v504 = vadd.f32 %v503, %v483
    %v505 = vadd.f32 %v504, %v485
    %v506 = vadd.f32 %v505, %v487
    %v507 = vadd.f32 %v506, %v489
    %v508 = vadd.f32 %v507, %v491
    %v509 = vadd.f32 %v508, %v493
    %v510 = vrot.slane %v509, 4
    %v511 = vadd.f32 %v509, %v510
    %v512 = vrot.slane %v511, 2
    %v513 = vadd.f32 %v511, %v512
    %v514 = vrot.slane %v513, 1
    %v515 = vadd.f32 %v513, %v514
    %v516 = vadd.f32 %v464, %v466
    %v517 = vadd.f32 %v516, %v468
    %v518 = vadd.f32 %v517, %v470
    %v519 = vadd.f32 %v518, %v472
    %v520 = vadd.f32 %v519, %v474
    %v521 = vadd.f32 %v520, %v476
    %v522 = vadd.f32 %v521, %v478
    %v523 = vadd.f32 %v522, %v480
    %v524 = vadd.f32 %v523, %v482
    %v525 = vadd.f32 %v524, %v484
    %v526 = vadd.f32 %v525, %v486
    %v527 = vadd.f32 %v526, %v488
    %v528 = vadd.f32 %v527, %v490
    %v529 = vadd.f32 %v528, %v492
    %v530 = vadd.f32 %v529, %v494
    %v531 = vrot.slane %v530, 4
    %v532 = vadd.f32 %v530, %v531
    %v533 = vrot.slane %v532, 2
    %v534 = vadd.f32 %v532, %v533
    %v535 = vrot.slane %v534, 1
    %v536 = vadd.f32 %v534, %v535
    %v537 = vmul.f32 %v515, %v460
    %v538 = vmul.f32 %v536, %v460
    %v539 = vmul.f32 %v461, %v461
    %v540 = vmul.f32 %v462, %v462
    %v541 = vsub.f32 %v537, %v539
    %v542 = vsub.f32 %v538, %v540
    %s543 = smul.u32 0, 2
    %s544 = scalar_lea.vmem %s2, %s543
    %v545 = vld [vmem:[%s544] sm:$0x3]
    %s546 = scalar_lea.vmem %s3, %s543
    %v547 = vld [vmem:[%s546] sm:$0x3]
    %v548 = vadd.f32 %v541, 1e-05
    %v549 = vadd.f32 %v542, 1e-05
    %v550 = vrsqrt.pop %v548
    %v551 = vrsqrt.pop %v549
    %v554 = vcombine.low %v550, %v551
    %v556 = vunpack.c.l.s4 1966171168
    %v557 = vunpack.c.0.s8 %v556
    %v558 = vlaneseq
    %v559 = vshrl.u32 %v558, 7
    %v560 = vsub.s32 %v557, %v559
    %v561 = vrot.slane %v554, %v560
    %v563 = vunpack.c.l.s4 1966171168
    %v564 = vunpack.c.0.s8 %v563
    %v565 = vlaneseq
    %v566 = vshrl.u32 %v565, 7
    %v567 = vsub.s32 %v564, %v566
    %v568 = vrot.slane %v561, %v567
    %v570 = vmul.f32 %v545, %v568
    %v572 = vlaneseq
    %v573 = vshrl.u32 %v572, 7
    %v574 = vsub.s32 0, %v573
    %v575 = vrot.slane %v570, %v574
    %v576 = vlaneseq
    %v577 = vshrl.u32 %v576, 7
    %v578 = vsub.s32 1, %v577
    %v579 = vrot.slane %v570, %v578
    %v582 = vmul.f32 %v461, %v575
    %v583 = vmul.f32 %v462, %v579
    %v586 = vcombine.low %v582, %v583
    %v588 = vunpack.c.l.s4 1966171168
    %v589 = vunpack.c.0.s8 %v588
    %v590 = vlaneseq
    %v591 = vshrl.u32 %v590, 7
    %v592 = vsub.s32 %v589, %v591
    %v593 = vrot.slane %v586, %v592
    %v595 = vunpack.c.l.s4 1966171168
    %v596 = vunpack.c.0.s8 %v595
    %v597 = vlaneseq
    %v598 = vshrl.u32 %v597, 7
    %v599 = vsub.s32 %v596, %v598
    %v600 = vrot.slane %v593, %v599
    %v602 = vsub.f32 %v547, %v600
    %v603 = vmul.f32 %v340, %v575
    %v604 = vmul.f32 %v342, %v579
    %v605 = vmul.f32 %v344, %v575
    %v606 = vmul.f32 %v346, %v579
    %v607 = vmul.f32 %v350, %v575
    %v608 = vmul.f32 %v352, %v579
    %v609 = vmul.f32 %v354, %v575
    %v610 = vmul.f32 %v356, %v579
    %v611 = vmul.f32 %v360, %v575
    %v612 = vmul.f32 %v362, %v579
    %v613 = vmul.f32 %v364, %v575
    %v614 = vmul.f32 %v366, %v579
    %v615 = vmul.f32 %v370, %v575
    %v616 = vmul.f32 %v372, %v579
    %v617 = vmul.f32 %v374, %v575
    %v618 = vmul.f32 %v376, %v579
    %v619 = vmul.f32 %v380, %v575
    %v620 = vmul.f32 %v382, %v579
    %v621 = vmul.f32 %v384, %v575
    %v622 = vmul.f32 %v386, %v579
    %v623 = vmul.f32 %v390, %v575
    %v624 = vmul.f32 %v392, %v579
    %v625 = vmul.f32 %v394, %v575
    %v626 = vmul.f32 %v396, %v579
    %v627 = vmul.f32 %v400, %v575
    %v628 = vmul.f32 %v402, %v579
    %v629 = vmul.f32 %v404, %v575
    %v630 = vmul.f32 %v406, %v579
    %v631 = vmul.f32 %v410, %v575
    %v632 = vmul.f32 %v412, %v579
    %v633 = vmul.f32 %v414, %v575
    %v634 = vmul.f32 %v416, %v579
    %v636 = vlaneseq
    %v637 = vshrl.u32 %v636, 7
    %v638 = vsub.s32 0, %v637
    %v639 = vrot.slane %v602, %v638
    %v640 = vlaneseq
    %v641 = vshrl.u32 %v640, 7
    %v642 = vsub.s32 1, %v641
    %v643 = vrot.slane %v602, %v642
    %v646 = vadd.f32 %v603, %v639
    %v647 = vadd.f32 %v604, %v643
    %v648 = vadd.f32 %v605, %v639
    %v649 = vadd.f32 %v606, %v643
    %v650 = vadd.f32 %v607, %v639
    %v651 = vadd.f32 %v608, %v643
    %v652 = vadd.f32 %v609, %v639
    %v653 = vadd.f32 %v610, %v643
    %v654 = vadd.f32 %v611, %v639
    %v655 = vadd.f32 %v612, %v643
    %v656 = vadd.f32 %v613, %v639
    %v657 = vadd.f32 %v614, %v643
    %v658 = vadd.f32 %v615, %v639
    %v659 = vadd.f32 %v616, %v643
    %v660 = vadd.f32 %v617, %v639
    %v661 = vadd.f32 %v618, %v643
    %v662 = vadd.f32 %v619, %v639
    %v663 = vadd.f32 %v620, %v643
    %v664 = vadd.f32 %v621, %v639
    %v665 = vadd.f32 %v622, %v643
    %v666 = vadd.f32 %v623, %v639
    %v667 = vadd.f32 %v624, %v643
    %v668 = vadd.f32 %v625, %v639
    %v669 = vadd.f32 %v626, %v643
    %v670 = vadd.f32 %v627, %v639
    %v671 = vadd.f32 %v628, %v643
    %v672 = vadd.f32 %v629, %v639
    %v673 = vadd.f32 %v630, %v643
    %v674 = vadd.f32 %v631, %v639
    %v675 = vadd.f32 %v632, %v643
    %v676 = vadd.f32 %v633, %v639
    %v677 = vadd.f32 %v634, %v643
    %v678 = vmax.f32 %v646, 0.0
    %v679 = vmax.f32 %v647, 0.0
    %v680 = vmax.f32 %v648, 0.0
    %v681 = vmax.f32 %v649, 0.0
    %v682 = vmax.f32 %v650, 0.0
    %v683 = vmax.f32 %v651, 0.0
    %v684 = vmax.f32 %v652, 0.0
    %v685 = vmax.f32 %v653, 0.0
    %v686 = vmax.f32 %v654, 0.0
    %v687 = vmax.f32 %v655, 0.0
    %v688 = vmax.f32 %v656, 0.0
    %v689 = vmax.f32 %v657, 0.0
    %v690 = vmax.f32 %v658, 0.0
    %v691 = vmax.f32 %v659, 0.0
    %v692 = vmax.f32 %v660, 0.0
    %v693 = vmax.f32 %v661, 0.0
    %v694 = vmax.f32 %v662, 0.0
    %v695 = vmax.f32 %v663, 0.0
    %v696 = vmax.f32 %v664, 0.0
    %v697 = vmax.f32 %v665, 0.0
    %v698 = vmax.f32 %v666, 0.0
    %v699 = vmax.f32 %v667, 0.0
    %v700 = vmax.f32 %v668, 0.0
    %v701 = vmax.f32 %v669, 0.0
    %v702 = vmax.f32 %v670, 0.0
    %v703 = vmax.f32 %v671, 0.0
    %v704 = vmax.f32 %v672, 0.0
    %v705 = vmax.f32 %v673, 0.0
    %v706 = vmax.f32 %v674, 0.0
    %v707 = vmax.f32 %v675, 0.0
    %v708 = vmax.f32 %v676, 0.0
    %v709 = vmax.f32 %v677, 0.0
    %v710 = vpack.c.bf16 %v680, %v678
    %v711 = vpack.c.bf16 %v681, %v679
    %v712 = vpack.c.bf16 %v684, %v682
    %v713 = vpack.c.bf16 %v685, %v683
    %v714 = vpack.c.bf16 %v688, %v686
    %v715 = vpack.c.bf16 %v689, %v687
    %v716 = vpack.c.bf16 %v692, %v690
    %v717 = vpack.c.bf16 %v693, %v691
    %v718 = vpack.c.bf16 %v696, %v694
    %v719 = vpack.c.bf16 %v697, %v695
    %v720 = vpack.c.bf16 %v700, %v698
    %v721 = vpack.c.bf16 %v701, %v699
    %v722 = vpack.c.bf16 %v704, %v702
    %v723 = vpack.c.bf16 %v705, %v703
    %v724 = vpack.c.bf16 %v708, %v706
    %v725 = vpack.c.bf16 %v709, %v707
    %v726 = vld [vmem:[#allocation6] sm:$0xf]
    %v727 = vld [vmem:[#allocation6 + $0x4] sm:$0xf]
    %v728 = vld [vmem:[#allocation6 + $0x8] sm:$0xf]
    %v729 = vld [vmem:[#allocation6 + $0xc] sm:$0xf]
    %v730 = vld [vmem:[#allocation6 + $0x10] sm:$0xf]
    %v731 = vld [vmem:[#allocation6 + $0x14] sm:$0xf]
    %v732 = vld [vmem:[#allocation6 + $0x18] sm:$0xf]
    %v733 = vld [vmem:[#allocation6 + $0x1c] sm:$0xf]
    %v734 = vld [vmem:[#allocation6 + $0x20] sm:$0xf]
    %v735 = vld [vmem:[#allocation6 + $0x24] sm:$0xf]
    %v736 = vld [vmem:[#allocation6 + $0x28] sm:$0xf]
    %v737 = vld [vmem:[#allocation6 + $0x2c] sm:$0xf]
    %v738 = vld [vmem:[#allocation6 + $0x30] sm:$0xf]
    %v739 = vld [vmem:[#allocation6 + $0x34] sm:$0xf]
    %v740 = vld [vmem:[#allocation6 + $0x38] sm:$0xf]
    %v741 = vld [vmem:[#allocation6 + $0x3c] sm:$0xf]
    %v742 = vld [vmem:[#allocation6 + $0x40] sm:$0xf]
    %v743 = vld [vmem:[#allocation6 + $0x44] sm:$0xf]
    %v744 = vld [vmem:[#allocation6 + $0x48] sm:$0xf]
    %v745 = vld [vmem:[#allocation6 + $0x4c] sm:$0xf]
    %v746 = vld [vmem:[#allocation6 + $0x50] sm:$0xf]
    %v747 = vld [vmem:[#allocation6 + $0x54] sm:$0xf]
    %v748 = vld [vmem:[#allocation6 + $0x58] sm:$0xf]
    %v749 = vld [vmem:[#allocation6 + $0x5c] sm:$0xf]
    %v750 = vld [vmem:[#allocation6 + $0x60] sm:$0xf]
    %v751 = vld [vmem:[#allocation6 + $0x64] sm:$0xf]
    %v752 = vld [vmem:[#allocation6 + $0x68] sm:$0xf]
    %v753 = vld [vmem:[#allocation6 + $0x6c] sm:$0xf]
    %v754 = vld [vmem:[#allocation6 + $0x70] sm:$0xf]
    %v755 = vld [vmem:[#allocation6 + $0x74] sm:$0xf]
    %v756 = vld [vmem:[#allocation6 + $0x78] sm:$0xf]
    %v757 = vld [vmem:[#allocation6 + $0x7c] sm:$0xf]
    %v790 = vunpack.c.l.b16 %v726
    %v791 = vunpack.c.l.b16 %v727
    %v792 = vunpack.c.l.b16 %v728
    %v793 = vunpack.c.l.b16 %v729
    %v794 = vunpack.c.l.b16 %v730
    %v795 = vunpack.c.l.b16 %v731
    %v796 = vunpack.c.l.b16 %v732
    %v797 = vunpack.c.l.b16 %v733
    %v798 = vunpack.c.l.b16 %v734
    %v799 = vunpack.c.l.b16 %v735
    %v800 = vunpack.c.l.b16 %v736
    %v801 = vunpack.c.l.b16 %v737
    %v802 = vunpack.c.l.b16 %v738
    %v803 = vunpack.c.l.b16 %v739
    %v804 = vunpack.c.l.b16 %v740
    %v805 = vunpack.c.l.b16 %v741
    %v806 = vunpack.c.l.b16 %v742
    %v807 = vunpack.c.l.b16 %v743
    %v808 = vunpack.c.l.b16 %v744
    %v809 = vunpack.c.l.b16 %v745
    %v810 = vunpack.c.l.b16 %v746
    %v811 = vunpack.c.l.b16 %v747
    %v812 = vunpack.c.l.b16 %v748
    %v813 = vunpack.c.l.b16 %v749
    %v814 = vunpack.c.l.b16 %v750
    %v815 = vunpack.c.l.b16 %v751
    %v816 = vunpack.c.l.b16 %v752
    %v817 = vunpack.c.l.b16 %v753
    %v818 = vunpack.c.l.b16 %v754
    %v819 = vunpack.c.l.b16 %v755
    %v820 = vunpack.c.l.b16 %v756
    %v821 = vunpack.c.l.b16 %v757
    %v822 = vpack.c.b16 %v791, %v790
    %v823 = vpack.c.b16 %v793, %v792
    %v824 = vpack.c.b16 %v795, %v794
    %v825 = vpack.c.b16 %v797, %v796
    %v826 = vpack.c.b16 %v799, %v798
    %v827 = vpack.c.b16 %v801, %v800
    %v828 = vpack.c.b16 %v803, %v802
    %v829 = vpack.c.b16 %v805, %v804
    %v830 = vpack.c.b16 %v807, %v806
    %v831 = vpack.c.b16 %v809, %v808
    %v832 = vpack.c.b16 %v811, %v810
    %v833 = vpack.c.b16 %v813, %v812
    %v834 = vpack.c.b16 %v815, %v814
    %v835 = vpack.c.b16 %v817, %v816
    %v836 = vpack.c.b16 %v819, %v818
    %v837 = vpack.c.b16 %v821, %v820
    %854 = vmatprep.subr.bf16.mxu0 0
    %855 = vmatpush1.bf16.msra.mxu0 %v822
    %856 = vmatprep.subr.bf16.mxu0 0
    %857 = vmatpush1.bf16.msra.mxu0 %v823
    %858 = vmatprep.subr.bf16.mxu0 0
    %859 = vmatpush1.bf16.msra.mxu0 %v824
    %860 = vmatprep.subr.bf16.mxu0 0
    %861 = vmatpush1.bf16.msra.mxu0 %v825
    %862 = vmatprep.subr.bf16.mxu0 0
    %863 = vmatpush1.bf16.msra.mxu0 %v826
    %864 = vmatprep.subr.bf16.mxu0 0
    %865 = vmatpush1.bf16.msra.mxu0 %v827
    %866 = vmatprep.subr.bf16.mxu0 0
    %867 = vmatpush1.bf16.msra.mxu0 %v828
    %868 = vmatprep.subr.bf16.mxu0 0
    %869 = vmatpush1.bf16.msra.mxu0 %v829
    %870 = vmatprep.subr.bf16.mxu0 0
    %871 = vmatpush1.bf16.msra.mxu0 %v830
    %872 = vmatprep.subr.bf16.mxu0 0
    %873 = vmatpush1.bf16.msra.mxu0 %v831
    %874 = vmatprep.subr.bf16.mxu0 0
    %875 = vmatpush1.bf16.msra.mxu0 %v832
    %876 = vmatprep.subr.bf16.mxu0 0
    %877 = vmatpush1.bf16.msra.mxu0 %v833
    %878 = vmatprep.subr.bf16.mxu0 0
    %879 = vmatpush1.bf16.msra.mxu0 %v834
    %880 = vmatprep.subr.bf16.mxu0 0
    %881 = vmatpush1.bf16.msra.mxu0 %v835
    %882 = vmatprep.subr.bf16.mxu0 0
    %883 = vmatpush1.bf16.msra.mxu0 %v836
    %884 = vmatprep.subr.bf16.mxu0 0
    %885 = vmatpush1.bf16.msra.mxu0 %v837
    %886 = vmatprep.mubr.bf16.mxu0 %v711
    %887 = vmatmul.mubr.bf16.gmra.mrb[0].mxu0 %v710
    %v888 = vpop.f32.mrb[0].mxu0
    %v889 = vadd.f32 0.0, %v888
    %v890 = vpop.f32.mrb[0].mxu0
    %v891 = vpop.f32.mrb[0].mxu0
    %v892 = vadd.f32 0.0, %v891
    %v893 = vpop.f32.mrb[0].mxu0
    %894 = vmatprep.mubr.bf16.mxu0 %v713
    %895 = vmatmul.mubr.bf16.gmra.mrb[0].mxu0 %v712
    %v896 = vpop.f32.mrb[0].mxu0
    %v897 = vadd.f32 0.0, %v896
    %v898 = vpop.f32.mrb[0].mxu0
    %v899 = vpop.f32.mrb[0].mxu0
    %v900 = vadd.f32 0.0, %v899
    %v901 = vpop.f32.mrb[0].mxu0
    %902 = vmatprep.mubr.bf16.mxu0 %v715
    %903 = vmatmul.mubr.bf16.gmra.mrb[0].mxu0 %v714
    %v904 = vpop.f32.mrb[0].mxu0
    %v905 = vadd.f32 0.0, %v904
    %v906 = vpop.f32.mrb[0].mxu0
    %v907 = vpop.f32.mrb[0].mxu0
    %v908 = vadd.f32 0.0, %v907
    %v909 = vpop.f32.mrb[0].mxu0
    %910 = vmatprep.mubr.bf16.mxu0 %v717
    %911 = vmatmul.mubr.bf16.gmra.mrb[0].mxu0 %v716
    %v912 = vpop.f32.mrb[0].mxu0
    %v913 = vadd.f32 0.0, %v912
    %v914 = vpop.f32.mrb[0].mxu0
    %v915 = vpop.f32.mrb[0].mxu0
    %v916 = vadd.f32 0.0, %v915
    %v917 = vpop.f32.mrb[0].mxu0
    %918 = vmatprep.mubr.bf16.mxu0 %v719
    %919 = vmatmul.mubr.bf16.gmra.mrb[0].mxu0 %v718
    %v920 = vpop.f32.mrb[0].mxu0
    %v921 = vadd.f32 0.0, %v920
    %v922 = vpop.f32.mrb[0].mxu0
    %v923 = vpop.f32.mrb[0].mxu0
    %v924 = vadd.f32 0.0, %v923
    %v925 = vpop.f32.mrb[0].mxu0
    %926 = vmatprep.mubr.bf16.mxu0 %v721
    %927 = vmatmul.mubr.bf16.gmra.mrb[0].mxu0 %v720
    %v928 = vpop.f32.mrb[0].mxu0
    %v929 = vadd.f32 0.0, %v928
    %v930 = vpop.f32.mrb[0].mxu0
    %v931 = vpop.f32.mrb[0].mxu0
    %v932 = vadd.f32 0.0, %v931
    %v933 = vpop.f32.mrb[0].mxu0
    %934 = vmatprep.mubr.bf16.mxu0 %v723
    %935 = vmatmul.mubr.bf16.gmra.mrb[0].mxu0 %v722
    %v936 = vpop.f32.mrb[0].mxu0
    %v937 = vadd.f32 0.0, %v936
    %v938 = vpop.f32.mrb[0].mxu0
    %v939 = vpop.f32.mrb[0].mxu0
    %v940 = vadd.f32 0.0, %v939
    %v941 = vpop.f32.mrb[0].mxu0
    %942 = vmatprep.mubr.bf16.mxu0 %v725
    %943 = vmatmul.mubr.bf16.gmra.mrb[0].mxu0 %v724
    %v944 = vpop.f32.mrb[0].mxu0
    %v945 = vadd.f32 0.0, %v944
    %v946 = vpop.f32.mrb[0].mxu0
    %v947 = vpop.f32.mrb[0].mxu0
    %v948 = vadd.f32 0.0, %v947
    %v949 = vpop.f32.mrb[0].mxu0
    %950 = vdwg.mxu0
    %p951 = scmp.eq.s32.totalorder 0, 0
    // Predicated region
    $region38: #{neural_net_forward.1} parent=1 // pred_check
      %p952 = pneg %p951
    $region39: #{neural_net_forward.1} parent=1 // pred_check_branch
      %954 = sbr.rel (%p952) target = $region41
    $region40: #{neural_net_forward.1} parent=1 // pred_region
      %v955 = vld [vmem:[%s5] sm:$0x1]
      %v957 = vlaneseq
      %v958 = vshrl.u32 %v957, 7
      %v959 = vsub.s32 0, %v958
      %v960 = vrot.slane %v955, %v959
      %v962 = vadd.f32 %v889, %v960
      %v963 = vadd.f32 %v892, %v960
      %v964 = vadd.f32 %v897, %v960
      %v965 = vadd.f32 %v900, %v960
      %v966 = vadd.f32 %v905, %v960
      %v967 = vadd.f32 %v908, %v960
      %v968 = vadd.f32 %v913, %v960
      %v969 = vadd.f32 %v916, %v960
      %v970 = vadd.f32 %v921, %v960
      %v971 = vadd.f32 %v924, %v960
      %v972 = vadd.f32 %v929, %v960
      %v973 = vadd.f32 %v932, %v960
      %v974 = vadd.f32 %v937, %v960
      %v975 = vadd.f32 %v940, %v960
      %v976 = vadd.f32 %v945, %v960
      %v977 = vadd.f32 %v948, %v960
      %978 = vst [vmem:[%s6] sm:$0xff] %v962
      %979 = vst [vmem:[%s6 + $0x8] sm:$0xff] %v963
      %980 = vst [vmem:[%s6 + $0x10] sm:$0xff] %v964
      %981 = vst [vmem:[%s6 + $0x18] sm:$0xff] %v965
      %982 = vst [vmem:[%s6 + $0x20] sm:$0xff] %v966
      %983 = vst [vmem:[%s6 + $0x28] sm:$0xff] %v967
      %984 = vst [vmem:[%s6 + $0x30] sm:$0xff] %v968
      %985 = vst [vmem:[%s6 + $0x38] sm:$0xff] %v969
      %986 = vst [vmem:[%s6 + $0x40] sm:$0xff] %v970
      %987 = vst [vmem:[%s6 + $0x48] sm:$0xff] %v971
      %988 = vst [vmem:[%s6 + $0x50] sm:$0xff] %v972
      %989 = vst [vmem:[%s6 + $0x58] sm:$0xff] %v973
      %990 = vst [vmem:[%s6 + $0x60] sm:$0xff] %v974
      %991 = vst [vmem:[%s6 + $0x68] sm:$0xff] %v975
      %992 = vst [vmem:[%s6 + $0x70] sm:$0xff] %v976
      %993 = vst [vmem:[%s6 + $0x78] sm:$0xff] %v977
    $region41: #{neural_net_forward.1} parent=1 // pred_fallthru
      _
    %p994 = scmp.ne.s32.totalorder 0, 0
    // Predicated region
    $region42: #{neural_net_forward.1} parent=1 // pred_check
      %p995 = pneg %p994
    $region43: #{neural_net_forward.1} parent=1 // pred_check_branch
      %997 = sbr.rel (%p995) target = $region45
    $region44: #{neural_net_forward.1} parent=1 // pred_region
      %v998 = vld [vmem:[%s6] sm:$0xff]
      %v999 = vld [vmem:[%s6 + $0x8] sm:$0xff]
      %v1000 = vld [vmem:[%s6 + $0x10] sm:$0xff]
      %v1001 = vld [vmem:[%s6 + $0x18] sm:$0xff]
      %v1002 = vld [vmem:[%s6 + $0x20] sm:$0xff]
      %v1003 = vld [vmem:[%s6 + $0x28] sm:$0xff]
      %v1004 = vld [vmem:[%s6 + $0x30] sm:$0xff]
      %v1005 = vld [vmem:[%s6 + $0x38] sm:$0xff]
      %v1006 = vld [vmem:[%s6 + $0x40] sm:$0xff]
      %v1007 = vld [vmem:[%s6 + $0x48] sm:$0xff]
      %v1008 = vld [vmem:[%s6 + $0x50] sm:$0xff]
      %v1009 = vld [vmem:[%s6 + $0x58] sm:$0xff]
      %v1010 = vld [vmem:[%s6 + $0x60] sm:$0xff]
      %v1011 = vld [vmem:[%s6 + $0x68] sm:$0xff]
      %v1012 = vld [vmem:[%s6 + $0x70] sm:$0xff]
      %v1013 = vld [vmem:[%s6 + $0x78] sm:$0xff]
      %v1014 = vadd.f32 %v998, %v889
      %v1015 = vadd.f32 %v999, %v892
      %v1016 = vadd.f32 %v1000, %v897
      %v1017 = vadd.f32 %v1001, %v900
      %v1018 = vadd.f32 %v1002, %v905
      %v1019 = vadd.f32 %v1003, %v908
      %v1020 = vadd.f32 %v1004, %v913
      %v1021 = vadd.f32 %v1005, %v916
      %v1022 = vadd.f32 %v1006, %v921
      %v1023 = vadd.f32 %v1007, %v924
      %v1024 = vadd.f32 %v1008, %v929
      %v1025 = vadd.f32 %v1009, %v932
      %v1026 = vadd.f32 %v1010, %v937
      %v1027 = vadd.f32 %v1011, %v940
      %v1028 = vadd.f32 %v1012, %v945
      %v1029 = vadd.f32 %v1013, %v948
      %1030 = vst [vmem:[%s6] sm:$0xff] %v1014
      %1031 = vst [vmem:[%s6 + $0x8] sm:$0xff] %v1015
      %1032 = vst [vmem:[%s6 + $0x10] sm:$0xff] %v1016
      %1033 = vst [vmem:[%s6 + $0x18] sm:$0xff] %v1017
      %1034 = vst [vmem:[%s6 + $0x20] sm:$0xff] %v1018
      %1035 = vst [vmem:[%s6 + $0x28] sm:$0xff] %v1019
      %1036 = vst [vmem:[%s6 + $0x30] sm:$0xff] %v1020
      %1037 = vst [vmem:[%s6 + $0x38] sm:$0xff] %v1021
      %1038 = vst [vmem:[%s6 + $0x40] sm:$0xff] %v1022
      %1039 = vst [vmem:[%s6 + $0x48] sm:$0xff] %v1023
      %1040 = vst [vmem:[%s6 + $0x50] sm:$0xff] %v1024
      %1041 = vst [vmem:[%s6 + $0x58] sm:$0xff] %v1025
      %1042 = vst [vmem:[%s6 + $0x60] sm:$0xff] %v1026
      %1043 = vst [vmem:[%s6 + $0x68] sm:$0xff] %v1027
      %1044 = vst [vmem:[%s6 + $0x70] sm:$0xff] %v1028
      %1045 = vst [vmem:[%s6 + $0x78] sm:$0xff] %v1029
    $region45: #{neural_net_forward.1} parent=1 // pred_fallthru
      _
    // Predicated region
    $region46: #{neural_net_forward.1} parent=1 // pred_check
      _
    $region47: #{neural_net_forward.1} parent=1 // pred_check_branch
      %1047 = sbr.rel (0) target = $region49
    $region48: #{neural_net_forward.1} parent=1 // pred_region
      _
    $region49: #{neural_net_forward.1} parent=1 // pred_fallthru
      _
    // Predicated region
    $region50: #{neural_net_forward.1} parent=1 // pred_check
      _
    $region51: #{neural_net_forward.1} parent=1 // pred_check_branch
      %1049 = sbr.rel (0) target = $region53
    $region52: #{neural_net_forward.1} parent=1 // pred_region
      _
    $region53: #{neural_net_forward.1} parent=1 // pred_fallthru
      _
    %1050 = vsyncpa [#allocation3], 1
    %1051 = vsyncpa [#allocation5], 1

</llo_original>
